<compile_context>
chip_gen: v7x
topology: tpu7x:2x2x1
jax: 0.10.0
libtpu: 0.0.40
codegen_flags: <defaults>
</compile_context>

<pallas_src>
import jax
import jax.numpy as jnp
from jax import lax
from jax.experimental import pallas as pl
from jax.experimental.pallas import tpu as pltpu

_LANE = 128


def _round_up(v, m):
    return (v + m - 1) // m * m


def _make_conv_kernel(n_taps, tl):
    """Stride-1 valid correlation over one (batch, L-tile, Cin-tile) grid cell."""

    def kernel(w_ref, b_ref, x_ref, xh_ref, o_ref, acc_ref, win_ref):
        # w_ref : (K, Cout_p, CI_TILE)  per-tap weight matrices (lane-dense in Cin)
        # b_ref : (Cout_p, 1)           bias (f32)
        # x_ref : (CI_TILE, TL)         main input tile
        # xh_ref: (CI_TILE, 128)        halo = first 128 columns of the next tile
        # o_ref : (Cout_p, TL)          output tile
        # acc_ref: f32 accumulator, persists across the ci (reduction) grid axis
        # win_ref: staging window (CI_TILE, TL + 128)
        ci = pl.program_id(2)

        @pl.when(ci == 0)
        def _init():
            acc_ref[...] = jnp.zeros_like(acc_ref)

        # Stage tile + halo contiguously so every tap is a shifted VMEM view.
        win_ref[:, :tl] = x_ref[...]
        win_ref[:, tl:] = xh_ref[...]

        acc = acc_ref[...]
        for d in range(n_taps):  # static unroll; n_taps is small (<= K)
            acc = acc + jnp.dot(w_ref[d], win_ref[:, d:d + tl],
                                preferred_element_type=jnp.float32)
        acc_ref[...] = acc

        @pl.when(ci == pl.num_programs(2) - 1)
        def _finalize():
            o_ref[...] = (acc_ref[...] + b_ref[...]).astype(o_ref.dtype)

    return kernel


def _pallas_conv1d_s1(x, weight, bias, out_len, *, compute_dtype=None,
                      lane_tile=512):
    """y[b,o,l] = bias[o] + sum_{c,d} weight[o,c,d] * x[b,c,l+d], l in [0,out_len).

    x is treated as zero-padded on the right; stride is always 1 (strides are
    handled by the callers via polyphase / phase-stacking rewrites).
    """
    B, Cin, Lin = x.shape
    Cout, Cin_w, K = weight.shape
    assert Cin_w == Cin and out_len >= 1 and 1 <= K <= _LANE + 1

    out_dtype = x.dtype
    cdt = jnp.dtype(compute_dtype) if compute_dtype is not None else jnp.dtype(x.dtype)

    # --- tile sizes --------------------------------------------------------
    tl = _round_up(min(out_len, lane_tile), _LANE)        # lane-dense output tile
    n_l = -(-out_len // tl)
    if Cin <= _LANE:
        cin_p = max(8, _round_up(Cin, 8))
        ci_tile = cin_p
    else:
        cin_p = _round_up(Cin, _LANE)
        ci_tile = _LANE
    n_ci = cin_p // ci_tile
    cout_p = max(8, _round_up(Cout, 8))
    lx = (n_l + 1) * tl                                    # room for the last halo

    # --- pad operands (one-pass glue; NO K-times im2col slab) --------------
    take = min(Lin, lx)
    x_p = jnp.zeros((B, cin_p, lx), cdt)
    x_p = x_p.at[:, :Cin, :take].set(x[:, :, :take].astype(cdt))

    w_p = jnp.zeros((K, cout_p, cin_p), cdt)
    w_p = w_p.at[:, :Cout, :Cin].set(jnp.transpose(weight, (2, 0, 1)).astype(cdt))

    b_p = jnp.zeros((cout_p, 1), jnp.float32)
    b_p = b_p.at[:Cout, 0].set(bias.astype(jnp.float32))

    halo_blocks = tl // _LANE
    itm = cdt.itemsize
    cost = pl.CostEstimate(
        flops=2 * B * n_l * tl * cout_p * cin_p * K,
        transcendentals=0,
        bytes_accessed=(B * cin_p * lx * itm                       # activations ~1x
                        + B * n_l * K * cout_p * cin_p * itm       # weight per L tile
                        + B * cout_p * n_l * tl * jnp.dtype(out_dtype).itemsize),
    )

    out = pl.pallas_call(
        _make_conv_kernel(K, tl),
        out_shape=jax.ShapeDtypeStruct((B, cout_p, n_l * tl), out_dtype),
        grid=(B, n_l, n_ci),
        in_specs=[
            pl.BlockSpec((K, cout_p, ci_tile), lambda b, l, ci: (0, 0, ci)),
            pl.BlockSpec((cout_p, 1), lambda b, l, ci: (0, 0)),
            pl.BlockSpec((None, ci_tile, tl), lambda b, l, ci: (b, ci, l)),
            pl.BlockSpec((None, ci_tile, _LANE),
                         lambda b, l, ci: (b, ci, (l + 1) * halo_blocks)),
        ],
        out_specs=pl.BlockSpec((None, cout_p, tl), lambda b, l, ci: (b, 0, l)),
        scratch_shapes=[
            pltpu.VMEM((cout_p, tl), jnp.float32),         # accumulator
            pltpu.VMEM((ci_tile, tl + _LANE), cdt),        # tile + halo window
        ],
        compiler_params=pltpu.CompilerParams(
            dimension_semantics=("parallel", "parallel", "arbitrary")),
        cost_estimate=cost,
    )(w_p, b_p, x_p, x_p)

    return out[:, :Cout, :out_len]


class Transpose1dLayer:
    """JAX/Pallas port of models/wavegan_star.py::Transpose1dLayer."""

    def __init__(self, in_channels, out_channels, kernel_size, stride,
                 padding=11, upsample=None, output_padding=1,
                 key=None, dtype=jnp.float32, compute_dtype=None):
        self.in_channels = in_channels
        self.out_channels = out_channels
        self.kernel_size = kernel_size
        self.stride = stride
        self.padding = padding
        self.upsample = upsample
        self.output_padding = output_padding
        self.compute_dtype = compute_dtype   # e.g. jnp.bfloat16 on v6e / v7x

        if key is None:
            key = jax.random.PRNGKey(0)
        k1, k2, k3, k4 = jax.random.split(key, 4)
        bound = 1.0 / float(in_channels * kernel_size) ** 0.5
        # Conv1d parameters (used on the upsample path)
        self.conv1d_w = jax.random.uniform(
            k1, (out_channels, in_channels, kernel_size), dtype, -bound, bound)
        self.conv1d_b = jax.random.uniform(k2, (out_channels,), dtype, -bound, bound)
        # ConvTranspose1d parameters (used when upsample is None)
        self.convT_w = jax.random.uniform(
            k3, (in_channels, out_channels, kernel_size), dtype, -bound, bound)
        self.convT_b = jax.random.uniform(k4, (out_channels,), dtype, -bound, bound)

    def _conv(self, x, w, b, out_len):
        return _pallas_conv1d_s1(x, w, b, out_len, compute_dtype=self.compute_dtype)

    def __call__(self, x):
        B, Cin, L = x.shape
        K = self.kernel_size
        s = int(self.stride)
        Cout = self.out_channels

        if self.upsample:
            u = int(self.upsample)
            # TODO(synk): fold the nearest-neighbour upsample into the kernel's
            # index math (polyphase resampling) to avoid materializing the
            # u-times larger activation in HBM before the conv.
            xu = jnp.repeat(x, u, axis=-1)                    # Upsample(mode='nearest')
            p = K // 2
            xp = jnp.pad(xu, ((0, 0), (0, 0), (p, p)))        # ConstantPad1d(K//2, 0)
            lp_len = xp.shape[-1]
            lout = (lp_len - K) // s + 1
            if s == 1:
                return self._conv(xp, self.conv1d_w, self.conv1d_b, lout)
            # Rewrite the stride-s conv as a stride-1 conv over phase-stacked
            # channels: Cin*s channels, ceil(K/s) taps -> no wasted MACs.
            kt = -(-K // s)
            m_src = lout + kt - 1
            need = s * m_src
            if need > lp_len:
                xp = jnp.pad(xp, ((0, 0), (0, 0), (0, need - lp_len)))
            xp = xp[:, :, :need]
            x_in = (xp.reshape(B, Cin, m_src, s)
                      .transpose(0, 1, 3, 2)
                      .reshape(B, Cin * s, m_src))
            w_pad = jnp.pad(self.conv1d_w, ((0, 0), (0, 0), (0, s * kt - K)))
            w_in = (w_pad.reshape(Cout, Cin, kt, s)
                         .transpose(0, 1, 3, 2)
                         .reshape(Cout, Cin * s, kt))
            return self._conv(x_in, w_in, self.conv1d_b, lout)
        else:
            # ConvTranspose1d via polyphase decomposition: each of the s output
            # phases r is a stride-1 correlation of x with the phase-r taps of
            # the (channel-transposed, tap-flipped) weight.  Phases become
            # extra output channels and are interleaved by a reshape + slice.
            # No zero-dilated input -> ~s x less compute and DMA.
            pad, op = self.padding, self.output_padding
            lout = (L - 1) * s - 2 * pad + K + op
            assert lout > 0
            kt = -(-K // s)                                   # taps per phase
            q_len = -(-(pad + lout) // s)                     # outputs per phase

            wt = jnp.transpose(self.convT_w, (1, 0, 2))       # (Cout, Cin, K)
            w_pad = jnp.pad(wt, ((0, 0), (0, 0), (0, s * kt - K)))
            w4 = w_pad.reshape(Cout, Cin, kt, s)              # [o,c,j,r] = wt[o,c,s*j+r]
            w4 = jnp.flip(w4, axis=2)                         # [o,c,d,r] = wt[o,c,s*(kt-1-d)+r]
            w_in = jnp.transpose(w4, (0, 3, 1, 2)).reshape(Cout * s, Cin, kt)
            b_in = jnp.repeat(self.convT_b, s)

            x_ext = jnp.pad(x, ((0, 0), (0, 0), (kt - 1, 0)))
            y = self._conv(x_ext, w_in, b_in, q_len)          # (B, Cout*s, Q)
            inter = (y.reshape(B, Cout, s, q_len)
                      .transpose(0, 1, 3, 2)
                      .reshape(B, Cout, s * q_len))
            return inter[:, :, pad:pad + lout]


if __name__ == "__main__":
    key = jax.random.PRNGKey(0)
    kx, kp1, kp2 = jax.random.split(key, 3)

    B, Cin, Cout, L, K, stride = 2, 4, 8, 16, 5, 2
    x = jax.random.normal(kx, (B, Cin, L), jnp.float32)
    p = K // 2

    # --- path 1: upsample -> constant pad -> strided conv1d ---
    layer_up = Transpose1dLayer(Cin, Cout, K, stride, padding=2,
                                upsample=2, output_padding=1, key=kp1)
    y_up = jax.block_until_ready(layer_up(x))

    xu = jnp.repeat(x, 2, axis=-1)
    ref_up = lax.conv_general_dilated(
        xu, layer_up.conv1d_w, (stride,), [(p, p)],
        dimension_numbers=("NCH", "OIH", "NCH")) + layer_up.conv1d_b[None, :, None]
    assert y_up.shape == ref_up.shape, (y_up.shape, ref_up.shape)
    assert jnp.allclose(y_up, ref_up, atol=1e-4, rtol=1e-4)

    # --- path 2: ConvTranspose1d (polyphase) ---
    layer_tr = Transpose1dLayer(Cin, Cout, K, stride, padding=2,
                                upsample=None, output_padding=1, key=kp2)
    y_tr = jax.block_until_ready(layer_tr(x))

    w_conv = jnp.flip(jnp.transpose(layer_tr.convT_w, (1, 0, 2)), axis=-1)
    lp = K - 1 - layer_tr.padding
    rp = K - 1 - layer_tr.padding + layer_tr.output_padding
    ref_tr = lax.conv_general_dilated(
        x, w_conv, (1,), [(lp, rp)], lhs_dilation=(stride,),
        dimension_numbers=("NCH", "OIH", "NCH")) + layer_tr.convT_b[None, :, None]
    assert y_tr.shape == ref_tr.shape, (y_tr.shape, ref_tr.shape)
    assert y_tr.shape == (B, Cout, (L - 1) * stride - 2 * 2 + K + 1)
    assert jnp.allclose(y_tr, ref_tr, atol=1e-4, rtol=1e-4)

    # --- path 3: upsample with stride 1 (the common WaveGAN config) ---
    layer_u1 = Transpose1dLayer(Cin, Cout, K, 1, padding=2,
                                upsample=4, output_padding=1, key=kp1)
    y_u1 = jax.block_until_ready(layer_u1(x))
    xu4 = jnp.repeat(x, 4, axis=-1)
    ref_u1 = lax.conv_general_dilated(
        xu4, layer_u1.conv1d_w, (1,), [(p, p)],
        dimension_numbers=("NCH", "OIH", "NCH")) + layer_u1.conv1d_b[None, :, None]
    assert y_u1.shape == ref_u1.shape, (y_u1.shape, ref_u1.shape)
    assert jnp.allclose(y_u1, ref_u1, atol=1e-4, rtol=1e-4)

    print("KERNEL_OK")
</pallas_src>

<mosaic_0001>
module attributes {stable_mosaic.version = 11 : i64} {
  func.func @kernel(%arg0: i32, %arg1: i32, %arg2: i32, %arg3: memref<3x8x8xf32, #tpu.memory_space<vmem>>, %arg4: memref<8x1xf32, #tpu.memory_space<vmem>>, %arg5: memref<1x8x128xf32, #tpu.memory_space<vmem>>, %arg6: memref<1x8x128xf32, #tpu.memory_space<vmem>>, %arg7: memref<1x8x128xf32, #tpu.memory_space<vmem>>, %arg8: memref<8x128xf32, #tpu.memory_space<vmem>>, %arg9: memref<8x256xf32, #tpu.memory_space<vmem>>) attributes {dimension_semantics = [#tpu.dimension_semantics<parallel>, #tpu.dimension_semantics<parallel>, #tpu.dimension_semantics<arbitrary>], iteration_bounds = array<i64: 2, 1, 1>, scalar_prefetch = 0 : i64, scratch_operands = 2 : i64, tpu.core_type = #tpu.core_type<tc>, window_params = [{transform_indices = @transform_0, window_bounds = array<i64: 3, 8, 8>}, {pipeline_mode = #tpu.pipeline_mode<synchronous>, transform_indices = @transform_1, window_bounds = array<i64: 8, 1>}, {transform_indices = @transform_2, window_bounds = array<i64: 1, 8, 128>}, {transform_indices = @transform_3, window_bounds = array<i64: 1, 8, 128>}, {transform_indices = @transform_4, window_bounds = array<i64: 1, 8, 128>}]} {
    %c0_i32 = arith.constant 0 : i32
    %0 = arith.cmpi eq, %arg2, %c0_i32 : i32
    %1 = arith.extui %0 : i1 to i32
    %c0_i32_0 = arith.constant 0 : i32
    %2 = arith.cmpi ne, %1, %c0_i32_0 : i32
    scf.if %2 {
      %cst_30 = arith.constant 0.000000e+00 : f32
      %29 = vector.broadcast %cst_30 : f32 to vector<8x128xf32>
      %c0_31 = arith.constant 0 : index
      %c0_32 = arith.constant 0 : index
      %30 = vector.load %arg8[%c0_31, %c0_32] : memref<8x128xf32, #tpu.memory_space<vmem>>, vector<8x128xf32>
      tpu.vector_store %arg8[%c0_31, %c0_32], %29 {strides = array<i32>} : memref<8x128xf32, #tpu.memory_space<vmem>>, vector<8x128xf32>,
    } else {
    }
    %c0 = arith.constant 0 : index
    %c0_1 = arith.constant 0 : index
    %c0_2 = arith.constant 0 : index
    %3 = vector.load %arg5[%c0, %c0_1, %c0_2] : memref<1x8x128xf32, #tpu.memory_space<vmem>>, vector<1x8x128xf32>
    %4 = vector.shape_cast %3 : vector<1x8x128xf32> to vector<8x128xf32>
    %c0_3 = arith.constant 0 : index
    %c0_4 = arith.constant 0 : index
    %5 = vector.load %arg9[%c0_3, %c0_4] : memref<8x256xf32, #tpu.memory_space<vmem>>, vector<8x128xf32>
    tpu.vector_store %arg9[%c0_3, %c0_4], %4 {strides = array<i32>} : memref<8x256xf32, #tpu.memory_space<vmem>>, vector<8x128xf32>,
    %c0_5 = arith.constant 0 : index
    %c0_6 = arith.constant 0 : index
    %c0_7 = arith.constant 0 : index
    %6 = vector.load %arg6[%c0_5, %c0_6, %c0_7] : memref<1x8x128xf32, #tpu.memory_space<vmem>>, vector<1x8x128xf32>
    %7 = vector.shape_cast %6 : vector<1x8x128xf32> to vector<8x128xf32>
    %c0_8 = arith.constant 0 : index
    %c128 = arith.constant 128 : index
    %8 = vector.load %arg9[%c0_8, %c128] : memref<8x256xf32, #tpu.memory_space<vmem>>, vector<8x128xf32>
    tpu.vector_store %arg9[%c0_8, %c128], %7 {strides = array<i32>} : memref<8x256xf32, #tpu.memory_space<vmem>>, vector<8x128xf32>,
    %c0_9 = arith.constant 0 : index
    %c0_10 = arith.constant 0 : index
    %9 = vector.load %arg8[%c0_9, %c0_10] : memref<8x128xf32, #tpu.memory_space<vmem>>, vector<8x128xf32>
    %c0_11 = arith.constant 0 : index
    %c0_12 = arith.constant 0 : index
    %c0_13 = arith.constant 0 : index
    %10 = vector.load %arg3[%c0_11, %c0_12, %c0_13] : memref<3x8x8xf32, #tpu.memory_space<vmem>>, vector<1x8x8xf32>
    %11 = vector.shape_cast %10 : vector<1x8x8xf32> to vector<8x8xf32>
    %c0_14 = arith.constant 0 : index
    %c0_15 = arith.constant 0 : index
    %12 = vector.load %arg9[%c0_14, %c0_15] : memref<8x256xf32, #tpu.memory_space<vmem>>, vector<8x128xf32>
    %cst = arith.constant dense<0.000000e+00> : vector<8x128xf32>
    %13 = tpu.matmul %11, %12, %cst {dimension_numbers = #tpu.dot_dimension_numbers<[1], [0], [0], [1], [0, 0, 1, 1], [], []>} : vector<8x8xf32>, vector<8x128xf32>, vector<8x128xf32> -> vector<8x128xf32>
    %14 = arith.addf %9, %13 : vector<8x128xf32>
    %c1 = arith.constant 1 : index
    %c0_16 = arith.constant 0 : index
    %c0_17 = arith.constant 0 : index
    %15 = vector.load %arg3[%c1, %c0_16, %c0_17] : memref<3x8x8xf32, #tpu.memory_space<vmem>>, vector<1x8x8xf32>
    %16 = vector.shape_cast %15 : vector<1x8x8xf32> to vector<8x8xf32>
    %c0_18 = arith.constant 0 : index
    %c1_19 = arith.constant 1 : index
    %17 = vector.load %arg9[%c0_18, %c1_19] : memref<8x256xf32, #tpu.memory_space<vmem>>, vector<8x128xf32>
    %cst_20 = arith.constant dense<0.000000e+00> : vector<8x128xf32>
    %18 = tpu.matmul %16, %17, %cst_20 {dimension_numbers = #tpu.dot_dimension_numbers<[1], [0], [0], [1], [0, 0, 1, 1], [], []>} : vector<8x8xf32>, vector<8x128xf32>, vector<8x128xf32> -> vector<8x128xf32>
    %19 = arith.addf %14, %18 : vector<8x128xf32>
    %c2 = arith.constant 2 : index
    %c0_21 = arith.constant 0 : index
    %c0_22 = arith.constant 0 : index
    %20 = vector.load %arg3[%c2, %c0_21, %c0_22] : memref<3x8x8xf32, #tpu.memory_space<vmem>>, vector<1x8x8xf32>
    %21 = vector.shape_cast %20 : vector<1x8x8xf32> to vector<8x8xf32>
    %c0_23 = arith.constant 0 : index
    %c2_24 = arith.constant 2 : index
    %22 = vector.load %arg9[%c0_23, %c2_24] : memref<8x256xf32, #tpu.memory_space<vmem>>, vector<8x128xf32>
    %cst_25 = arith.constant dense<0.000000e+00> : vector<8x128xf32>
    %23 = tpu.matmul %21, %22, %cst_25 {dimension_numbers = #tpu.dot_dimension_numbers<[1], [0], [0], [1], [0, 0, 1, 1], [], []>} : vector<8x8xf32>, vector<8x128xf32>, vector<8x128xf32> -> vector<8x128xf32>
    %24 = arith.addf %19, %23 : vector<8x128xf32>
    %c0_26 = arith.constant 0 : index
    %c0_27 = arith.constant 0 : index
    %25 = vector.load %arg8[%c0_26, %c0_27] : memref<8x128xf32, #tpu.memory_space<vmem>>, vector<8x128xf32>
    tpu.vector_store %arg8[%c0_26, %c0_27], %24 {strides = array<i32>} : memref<8x128xf32, #tpu.memory_space<vmem>>, vector<8x128xf32>,
    %c0_i32_28 = arith.constant 0 : i32
    %26 = arith.cmpi eq, %arg2, %c0_i32_28 : i32
    %27 = arith.extui %26 : i1 to i32
    %c0_i32_29 = arith.constant 0 : i32
    %28 = arith.cmpi ne, %27, %c0_i32_29 : i32
    scf.if %28 {
      %c0_30 = arith.constant 0 : index
      %c0_31 = arith.constant 0 : index
      %29 = vector.load %arg8[%c0_30, %c0_31] : memref<8x128xf32, #tpu.memory_space<vmem>>, vector<8x128xf32>
      %c0_32 = arith.constant 0 : index
      %c0_33 = arith.constant 0 : index
      %30 = vector.load %arg4[%c0_32, %c0_33] : memref<8x1xf32, #tpu.memory_space<vmem>>, vector<8x1xf32>
      %31 = vector.broadcast %30 : vector<8x1xf32> to vector<8x128xf32>
      %32 = arith.addf %29, %31 : vector<8x128xf32>
      %c0_34 = arith.constant 0 : index
      %c0_35 = arith.constant 0 : index
      %c0_36 = arith.constant 0 : index
      %33 = vector.load %arg7[%c0_34, %c0_35, %c0_36] : memref<1x8x128xf32, #tpu.memory_space<vmem>>, vector<1x8x128xf32>
      %34 = vector.shape_cast %33 : vector<1x8x128xf32> to vector<8x128xf32>
      %35 = vector.shape_cast %32 : vector<8x128xf32> to vector<1x8x128xf32>
      tpu.vector_store %arg7[%c0_34, %c0_35, %c0_36], %35 {strides = array<i32>} : memref<1x8x128xf32, #tpu.memory_space<vmem>>, vector<1x8x128xf32>,
    } else {
    }
    return
  }
  func.func @transform_0(%arg0: i32, %arg1: i32, %arg2: i32) -> (i32, i32, i32) {
    %c0_i32 = arith.constant 0 : i32
    %c0_i32_0 = arith.constant 0 : i32
    %c0_i32_1 = arith.constant 0 : i32
    return %c0_i32, %c0_i32_0, %arg2 : i32, i32, i32
  }
  func.func @transform_1(%arg0: i32, %arg1: i32, %arg2: i32) -> (i32, i32) {
    %c0_i32 = arith.constant 0 : i32
    %c0_i32_0 = arith.constant 0 : i32
    %c0_i32_1 = arith.constant 0 : i32
    return %c0_i32, %c0_i32_0 : i32, i32
  }
  func.func @transform_2(%arg0: i32, %arg1: i32, %arg2: i32) -> (i32, i32, i32) {
    %c0_i32 = arith.constant 0 : i32
    return %arg0, %arg2, %arg1 : i32, i32, i32
  }
  func.func @transform_3(%arg0: i32, %arg1: i32, %arg2: i32) -> (i32, i32, i32) {
    %c1_i32 = arith.constant 1 : i32
    %0 = arith.addi %arg1, %c1_i32 : i32
    %c1_i32_0 = arith.constant 1 : i32
    %1 = arith.muli %0, %c1_i32_0 : i32
    %c0_i32 = arith.constant 0 : i32
    return %arg0, %arg2, %1 : i32, i32, i32
  }
  func.func @transform_4(%arg0: i32, %arg1: i32, %arg2: i32) -> (i32, i32, i32) {
    %c0_i32 = arith.constant 0 : i32
    %c0_i32_0 = arith.constant 0 : i32
    return %arg0, %c0_i32, %arg1 : i32, i32, i32
  }
}

</mosaic_0001>

<llo_original>
// kernel: tpu_custom_call.1
$region0: #{tpu_custom_call.1}
  #allocation0 [shape = 'u32[]', space=smem, size = 0x4, offset = 0x4, fixed_abs, tag = 'smem constant byte address 0x4 - core index']
  #allocation1 [shape = 'u32[144,128]{1,0:T(1,128)}', space=vmem, size = 0x12000, scoped, tag = 'internal scratch']
  #allocation2 [shape = 'f32[8,128]{1,0:T(8,128)}', space=vmem, size = 0x1000, scoped, tag = 'scratch operand']
  #allocation3 [shape = 'f32[8,256]{1,0:T(8,128)}', space=vmem, size = 0x2000, scoped, tag = 'scratch operand']
  %s0 = inlined_call_operand.hbm [shape: f32[3,8,8], index: 0, kind: input, shape index: {}]
  %s1 = inlined_call_operand.vmem [shape: f32[8,1], index: 1, kind: input, shape index: {}]
  %s2 = inlined_call_operand.hbm [shape: f32[2,8,256], index: 2, kind: input, shape index: {}]
  %s3 = inlined_call_operand.hbm [shape: f32[2,8,256], index: 3, kind: input, shape index: {}]
  %s4 = inlined_call_operand.hbm [shape: f32[2,8,128], index: 4, kind: output, shape index: {}]
  %s5 = sld [smem:[#allocation0]]
  $region69: #{tpu_custom_call.1} parent=0
    _
  %s7 = ssub.s32 1, %s5
  %s8 = scalar_select 0, %s7, %s5
  $region1: #{tpu_custom_call.1} parent=0
    #allocation4 [shape = 'u8[12288]{0}', space=vmem, size = 0x3000, scoped, tag = 'input window, operand 0, single buffered']
    #allocation5 [shape = 's32[2]{0}', space=sflag, size = 0x8, scoped, tag = 'scoped memory for tpu_custom_call.1']
    #allocation6 [shape = 's32[2]{0}', space=sflag, size = 0x8, scoped, tag = 'scoped memory for tpu_custom_call.1']
    #allocation7 [shape = 'u8[8192]{0}', space=vmem, size = 0x2000, scoped, tag = 'input window, operand 2']
    #allocation8 [shape = 's32[2]{0}', space=sflag, size = 0x8, scoped, tag = 'scoped memory for tpu_custom_call.1']
    #allocation9 [shape = 'u8[8192]{0}', space=vmem, size = 0x2000, scoped, tag = 'input window, operand 3']
    #allocation10 [shape = 'u8[8192]{0}', space=vmem, size = 0x2000, scoped, tag = 'output window, operand 0']
    %9 = vsyncpa [#allocation5], 0
    %10 = vsyncpa [#allocation8], 0
    %s11 = scalar_lea.sflag [#allocation8], 1
    %12 = vsyncpa %s11, 0
    %13 = vsyncpa [#allocation6], 0
    %s14 = scalar_lea.sflag [#allocation6], 1
    %15 = vsyncpa %s14, 0
    loop: start=0, step=1, limit=4
    $region2: #{tpu_custom_call.1} parent=1 // loop_pre_header
      _
    $region3: #{tpu_custom_call.1} parent=1 // loop_header
      %s17 = sphi 0, %s21
      %p18 = scmp.ge.s32.totalorder %s17, 4
      %s24 = sphi 0, %s43
      %s25 = sphi 0, %s39
      %s26 = sphi 0, %s35
      %s27 = sphi 0, %s24
      %s28 = sphi 0, %s25
      %s29 = sphi 0, %s26
      %s30 = sphi 0, %s27
      %s31 = sphi 0, %s28
      %s32 = sphi 0, %s29
      %s46 = sphi 0, %s48
      %s49 = sphi 0, %s46
      %s50 = sphi 0, %s49
      %s66 = sphi 0, %s50
      %s70 = sphi 0, %s70
      %s72 = sphi 0, %s70
      %s73 = sphi 0, %s72
      %s87 = sphi 0, %s73
      %s97 = sphi 0, %s99
      %s100 = sphi 0, %s97
      %s101 = sphi 0, %s100
      %s117 = sphi 0, %s101
      %s129 = sphi 0, %s131
      %s132 = sphi 0, %s129
      %s133 = sphi 0, %s132
      %s149 = sphi 0, %s133
      %s157 = sphi 0, %s159
      %s160 = sphi 0, %s157
      %s161 = sphi 0, %s160
      %s177 = sphi 0, %s161
    $region4: #{tpu_custom_call.1} parent=1 // loop_header_branch
      %20 = sbr.rel (%p18) target = $region8
    $region5: #{tpu_custom_call.1} parent=1 // loop_body
      %s22 = ssub.s32 %s17, 1
      %s23 = ssub.s32 %s17, 2
      %s33 = sadd.s32 1, %s26
      %p34 = scmp.ge.s32.totalorder %s33, 1
      %s35 = scalar_select %p34, 0, %s33
      %s36 = sadd.s32 1, %s25
      %s37 = scalar_select %p34, %s36, %s25
      %p38 = scmp.ge.s32.totalorder %s37, 1
      %s39 = scalar_select %p38, 0, %s37
      %s40 = sadd.s32 1, %s24
      %s41 = scalar_select %p38, %s40, %s24
      %p42 = scmp.ge.s32.totalorder %s41, 2
      %s43 = scalar_select %p42, 0, %s41
      %s44 = ssub.s32 %s26, %s35
      %p45 = scmp.eq.s32.totalorder %s44, 0
      %s47 = sadd.s32 %s46, 1
      %s48 = scalar_select %p45, %s46, %s47
      %p51 = pneg %p45
      %p52 = scmp.eq.s32.totalorder %s17, 1
      %p53 = por %p51, %p52
      %p54 = scmp.ne.s32.totalorder %s46, %s49
      %p55 = scmp.eq.s32.totalorder %s17, 0
      %p56 = por %p54, %p55
      %p57 = scmp.ne.s32.totalorder %s46, %s49
      %p58 = scmp.eq.s32.totalorder %s22, 1
      %p59 = por %p57, %p58
      %p60 = scmp.ne.s32.totalorder %s49, %s50
      %p61 = scmp.eq.s32.totalorder %s22, 0
      %p62 = por %p60, %p61
      %p63 = scmp.ne.s32.totalorder %s49, %s50
      %p64 = scmp.eq.s32.totalorder %s23, 1
      %p65 = por %p63, %p64
      %p67 = scmp.ne.s32.totalorder %s50, %s66
      %p68 = scmp.eq.s32.totalorder %s23, 0
      %p69 = por %p67, %p68
      %s71 = sadd.s32 %s70, 1
      %p74 = scmp.eq.s32.totalorder %s17, 1
      %p75 = scmp.ne.s32.totalorder %s70, %s72
      %p76 = scmp.eq.s32.totalorder %s17, 0
      %p77 = por %p75, %p76
      %p78 = scmp.ne.s32.totalorder %s70, %s72
      %p79 = scmp.eq.s32.totalorder %s22, 1
      %p80 = por %p78, %p79
      %p81 = scmp.ne.s32.totalorder %s72, %s73
      %p82 = scmp.eq.s32.totalorder %s22, 0
      %p83 = por %p81, %p82
      %p84 = scmp.ne.s32.totalorder %s72, %s73
      %p85 = scmp.eq.s32.totalorder %s23, 1
      %p86 = por %p84, %p85
      %p88 = scmp.ne.s32.totalorder %s73, %s87
      %p89 = scmp.eq.s32.totalorder %s23, 0
      %p90 = por %p88, %p89
      %s91 = ssub.s32 %s24, %s43
      %s92 = ssub.s32 %s26, %s35
      %s93 = sor.u32 %s91, %s92
      %s94 = ssub.s32 %s25, %s39
      %s95 = sor.u32 %s93, %s94
      %p96 = scmp.eq.s32.totalorder %s95, 0
      %s98 = sadd.s32 %s97, 1
      %s99 = scalar_select %p96, %s97, %s98
      %p102 = pneg %p96
      %p103 = scmp.eq.s32.totalorder %s17, 1
      %p104 = por %p102, %p103
      %p105 = scmp.ne.s32.totalorder %s97, %s100
      %p106 = scmp.eq.s32.totalorder %s17, 0
      %p107 = por %p105, %p106
      %p108 = scmp.ne.s32.totalorder %s97, %s100
      %p109 = scmp.eq.s32.totalorder %s22, 1
      %p110 = por %p108, %p109
      %p111 = scmp.ne.s32.totalorder %s100, %s101
      %p112 = scmp.eq.s32.totalorder %s22, 0
      %p113 = por %p111, %p112
      %p114 = scmp.ne.s32.totalorder %s100, %s101
      %p115 = scmp.eq.s32.totalorder %s23, 1
      %p116 = por %p114, %p115
      %p118 = scmp.ne.s32.totalorder %s101, %s117
      %p119 = scmp.eq.s32.totalorder %s23, 0
      %p120 = por %p118, %p119
      %s121 = sadd.s32 %s25, 1
      %s122 = sadd.s32 %s39, 1
      %s123 = ssub.s32 %s24, %s43
      %s124 = ssub.s32 %s26, %s35
      %s125 = sor.u32 %s123, %s124
      %s126 = ssub.s32 %s121, %s122
      %s127 = sor.u32 %s125, %s126
      %p128 = scmp.eq.s32.totalorder %s127, 0
      %s130 = sadd.s32 %s129, 1
      %s131 = scalar_select %p128, %s129, %s130
      %p134 = pneg %p128
      %p135 = scmp.eq.s32.totalorder %s17, 1
      %p136 = por %p134, %p135
      %p137 = scmp.ne.s32.totalorder %s129, %s132
      %p138 = scmp.eq.s32.totalorder %s17, 0
      %p139 = por %p137, %p138
      %p140 = scmp.ne.s32.totalorder %s129, %s132
      %p141 = scmp.eq.s32.totalorder %s22, 1
      %p142 = por %p140, %p141
      %p143 = scmp.ne.s32.totalorder %s132, %s133
      %p144 = scmp.eq.s32.totalorder %s22, 0
      %p145 = por %p143, %p144
      %p146 = scmp.ne.s32.totalorder %s132, %s133
      %p147 = scmp.eq.s32.totalorder %s23, 1
      %p148 = por %p146, %p147
      %p150 = scmp.ne.s32.totalorder %s133, %s149
      %p151 = scmp.eq.s32.totalorder %s23, 0
      %p152 = por %p150, %p151
      %s153 = ssub.s32 %s24, %s43
      %s154 = ssub.s32 %s25, %s39
      %s155 = sor.u32 %s153, %s154
      %p156 = scmp.eq.s32.totalorder %s155, 0
      %s158 = sadd.s32 %s157, 1
      %s159 = scalar_select %p156, %s157, %s158
      %p162 = pneg %p156
      %p163 = scmp.eq.s32.totalorder %s17, 1
      %p164 = por %p162, %p163
      %p165 = scmp.ne.s32.totalorder %s157, %s160
      %p166 = scmp.eq.s32.totalorder %s17, 0
      %p167 = por %p165, %p166
      %p168 = scmp.ne.s32.totalorder %s157, %s160
      %p169 = scmp.eq.s32.totalorder %s22, 1
      %p170 = por %p168, %p169
      %p171 = scmp.ne.s32.totalorder %s160, %s161
      %p172 = scmp.eq.s32.totalorder %s22, 0
      %p173 = por %p171, %p172
      %p174 = scmp.ne.s32.totalorder %s160, %s161
      %p175 = scmp.eq.s32.totalorder %s23, 1
      %p176 = por %p174, %p175
      %p178 = scmp.ne.s32.totalorder %s161, %s177
      %p179 = scmp.eq.s32.totalorder %s23, 0
      %p180 = por %p178, %p179
      %p181 = scmp.le.s32.totalorder 1, %s17
      %p182 = scmp.lt.s32.totalorder %s17, 3
      %p183 = pnand %p181, %p182
      %p184 = pneg %p183
      // Predicated region
      $region9: #{tpu_custom_call.1} parent=5 // pred_check
        _
      $region10: #{tpu_custom_call.1} parent=5 // pred_check_branch
        %186 = sbr.rel (%p183) target = $region12
      $region11: #{tpu_custom_call.1} parent=5 // pred_region
        %s187 = ssub.s32 %s17, 1
        // Predicated region
        $region13: #{tpu_custom_call.1} parent=11 // pred_check
          %p188 = pneg %p62
        $region14: #{tpu_custom_call.1} parent=11 // pred_check_branch
          %190 = sbr.rel (%p188) target = $region16
        $region15: #{tpu_custom_call.1} parent=11 // pred_region
          %s192 = ssub.s32 384, 384
          %193 = vsyncadd [#allocation5], %s192
          %s194 = smul.addr %s29, 128
          %s195 = scalar_lea.hbm %s0, %s194
          %s196 = sshll.u32 [#allocation4], 4
          %s197 = int_to_ptr.vmem [resolvable:$true] %s196
          %202 = dma.hbm_to_vmem [thread:$0]  %s195, 384, %s197, [#allocation5], 128, 128, 8
        $region16: #{tpu_custom_call.1} parent=11 // pred_fallthru
          _
        // Predicated region
        $region17: #{tpu_custom_call.1} parent=11 // pred_check
          %p203 = pneg %p83
        $region18: #{tpu_custom_call.1} parent=11 // pred_check_branch
          %205 = sbr.rel (%p203) target = $region20
        $region19: #{tpu_custom_call.1} parent=11 // pred_region
          _
        $region20: #{tpu_custom_call.1} parent=11 // pred_fallthru
          _
      $region12: #{tpu_custom_call.1} parent=5 // pred_fallthru
        _
      %p206 = scmp.lt.s32.totalorder %s17, 2
      // Predicated region
      $region21: #{tpu_custom_call.1} parent=5 // pred_check
        %p207 = pneg %p206
      $region22: #{tpu_custom_call.1} parent=5 // pred_check_branch
        %209 = sbr.rel (%p207) target = $region24
      $region23: #{tpu_custom_call.1} parent=5 // pred_region
        // Predicated region
        $region25: #{tpu_custom_call.1} parent=23 // pred_check
          %p210 = pneg %p107
        $region26: #{tpu_custom_call.1} parent=23 // pred_check_branch
          %212 = sbr.rel (%p210) target = $region28
        $region27: #{tpu_custom_call.1} parent=23 // pred_region
          %s213 = sand.u32 %s17, 1
          %s214 = scalar_lea.sflag [#allocation8], %s213
          %s215 = sand.u32 %s97, 1
          %s216 = smul.addr %s215, 8
          %s217 = scalar_lea.vmem [#allocation7], %s216
          %s219 = ssub.s32 128, 128
          %220 = vsyncadd %s214, %s219
          %s221 = smul.addr %s26, 2
          %s222 = sadd.s32 %s25, %s221
          %s223 = smul.addr %s24, 2
          %s224 = sadd.s32 %s222, %s223
          %s225 = smul.addr %s224, 128
          %s226 = scalar_lea.hbm %s2, %s225
          %s228 = sshll.u32 %s217, 4
          %s229 = int_to_ptr.vmem [resolvable:$true] %s228
          %231 = dma.hbm_to_vmem [thread:$0]  %s226, 128, %s229, %s214
        $region28: #{tpu_custom_call.1} parent=23 // pred_fallthru
          _
        // Predicated region
        $region29: #{tpu_custom_call.1} parent=23 // pred_check
          %p232 = pneg %p139
        $region30: #{tpu_custom_call.1} parent=23 // pred_check_branch
          %234 = sbr.rel (%p232) target = $region32
        $region31: #{tpu_custom_call.1} parent=23 // pred_region
          %s235 = sand.u32 %s17, 1
          %s236 = scalar_lea.sflag [#allocation8], %s235
          %s237 = sand.u32 %s129, 1
          %s238 = smul.addr %s237, 8
          %s239 = scalar_lea.vmem [#allocation9], %s238
          %s240 = sadd.s32 %s25, 1
          %s242 = ssub.s32 128, 128
          %243 = vsyncadd %s236, %s242
          %s244 = smul.addr %s26, 2
          %s245 = sadd.s32 %s240, %s244
          %s246 = smul.addr %s24, 2
          %s247 = sadd.s32 %s245, %s246
          %s248 = smul.addr %s247, 128
          %s249 = scalar_lea.hbm %s3, %s248
          %s251 = sshll.u32 %s239, 4
          %s252 = int_to_ptr.vmem [resolvable:$true] %s251
          %254 = dma.hbm_to_vmem [thread:$0]  %s249, 128, %s252, %s236
        $region32: #{tpu_custom_call.1} parent=23 // pred_fallthru
          _
      $region24: #{tpu_custom_call.1} parent=5 // pred_fallthru
        _
      %p255 = scmp.le.s32.totalorder 1, %s17
      %p256 = scmp.lt.s32.totalorder %s17, 3
      %p257 = pnand %p255, %p256
      %p258 = pneg %p257
      // Predicated region
      $region33: #{tpu_custom_call.1} parent=5 // pred_check
        _
      $region34: #{tpu_custom_call.1} parent=5 // pred_check_branch
        %260 = sbr.rel (%p257) target = $region36
      $region35: #{tpu_custom_call.1} parent=5 // pred_region
        %s261 = ssub.s32 %s17, 1
        // Predicated region
        $region37: #{tpu_custom_call.1} parent=35 // pred_check
          %p262 = pneg %p62
        $region38: #{tpu_custom_call.1} parent=35 // pred_check_branch
          %264 = sbr.rel (%p262) target = $region40
        $region39: #{tpu_custom_call.1} parent=35 // pred_region
          %265 = dma.done [#allocation5], 384
        $region40: #{tpu_custom_call.1} parent=35 // pred_fallthru
          _
        %s266 = sand.u32 %s22, 1
        %s267 = scalar_lea.sflag [#allocation8], %s266
        %s268 = sand.u32 %s100, 1
        %s269 = smul.addr %s268, 8
        %s270 = scalar_lea.vmem [#allocation7], %s269
        // Predicated region
        $region41: #{tpu_custom_call.1} parent=35 // pred_check
          %p271 = pneg %p113
        $region42: #{tpu_custom_call.1} parent=35 // pred_check_branch
          %273 = sbr.rel (%p271) target = $region44
        $region43: #{tpu_custom_call.1} parent=35 // pred_region
          %274 = dma.done %s267, 128
        $region44: #{tpu_custom_call.1} parent=35 // pred_fallthru
          _
        %s275 = sand.u32 %s22, 1
        %s276 = scalar_lea.sflag [#allocation8], %s275
        %s277 = sand.u32 %s132, 1
        %s278 = smul.addr %s277, 8
        %s279 = scalar_lea.vmem [#allocation9], %s278
        // Predicated region
        $region45: #{tpu_custom_call.1} parent=35 // pred_check
          %p280 = pneg %p145
        $region46: #{tpu_custom_call.1} parent=35 // pred_check_branch
          %282 = sbr.rel (%p280) target = $region48
        $region47: #{tpu_custom_call.1} parent=35 // pred_region
          %283 = dma.done %s276, 128
        $region48: #{tpu_custom_call.1} parent=35 // pred_fallthru
          _
        %p284 = pneg %p62
        %p285 = pneg %p59
        %p286 = pneg %p83
        %p287 = pneg %p80
        %s288 = sand.u32 %s22, 1
        %s289 = scalar_lea.sflag [#allocation8], %s288
        %s290 = sand.u32 %s100, 1
        %s291 = smul.addr %s290, 8
        %s292 = scalar_lea.vmem [#allocation7], %s291
        %p293 = pneg %p113
        %p294 = pneg %p110
        %s295 = sand.u32 %s22, 1
        %s296 = scalar_lea.sflag [#allocation8], %s295
        %s297 = sand.u32 %s132, 1
        %s298 = smul.addr %s297, 8
        %s299 = scalar_lea.vmem [#allocation9], %s298
        %p300 = pneg %p145
        %p301 = pneg %p142
        %p302 = pneg %p173
        %p303 = pneg %p170
        %s304 = sand.u32 %s160, 1
        %s305 = scalar_lea.sflag [#allocation6], %s304
        %s306 = sand.u32 %s160, 1
        %s307 = smul.addr %s306, 8
        %s308 = scalar_lea.vmem [#allocation10], %s307
        %s309 = sadd.s32 %s28, 1
        %p310 = scmp.eq.s32.totalorder %s29, 0
        // Predicated region
        $region49: #{tpu_custom_call.1} parent=35 // pred_check
          %p311 = pneg %p310
        $region50: #{tpu_custom_call.1} parent=35 // pred_check_branch
          %313 = sbr.rel (%p311) target = $region52
        $region51: #{tpu_custom_call.1} parent=35 // pred_region
          %314 = vst [vmem:[#allocation2] sm:$0xff] 0.0
        $region52: #{tpu_custom_call.1} parent=35 // pred_fallthru
          _
        %v315 = vld [vmem:[%s270] sm:$0xff]
        %316 = vst [vmem:[#allocation3] sm:$0xff] %v315
        %v317 = vld [vmem:[%s279] sm:$0xff]
        %318 = vst [vmem:[#allocation3 + $0x8] sm:$0xff] %v317
        %v319 = vld [vmem:[#allocation2] sm:$0xff]
        %v320 = vld [vmem:[#allocation4] sm:$0xff]
        %v321 = vld [vmem:[#allocation3] sm:$0xff]
        %vm322 = vcmask 64512
        %v324 = vsel %vm322, %v320, 0
        %326 = vmatprep.subr.mxu0 0.0
        %327 = vmatpush1.msra.mxu0 %v321
        %328 = vmatprep.subr.mxu0 0.0
        %329 = vmatpush1.msra.mxu0 0.0
        %330 = vmatprep.subr.mxu0 0.0
        %331 = vmatpush1.msra.mxu0 0.0
        %332 = vmatprep.subr.mxu0 0.0
        %333 = vmatpush1.msra.mxu0 0.0
        %334 = vmatprep.subr.mxu0 0.0
        %335 = vmatpush1.msra.mxu0 0.0
        %336 = vmatprep.subr.mxu0 0.0
        %337 = vmatpush1.msra.mxu0 0.0
        %338 = vmatprep.subr.mxu0 0.0
        %339 = vmatpush1.msra.mxu0 0.0
        %340 = vmatprep.subr.mxu0 0.0
        %341 = vmatpush1.msra.mxu0 0.0
        %342 = vmatprep.subr.mxu0 0.0
        %343 = vmatpush1.msra.mxu0 0.0
        %344 = vmatprep.subr.mxu0 0.0
        %345 = vmatpush1.msra.mxu0 0.0
        %346 = vmatprep.subr.mxu0 0.0
        %347 = vmatpush1.msra.mxu0 0.0
        %348 = vmatprep.subr.mxu0 0.0
        %349 = vmatpush1.msra.mxu0 0.0
        %350 = vmatprep.subr.mxu0 0.0
        %351 = vmatpush1.msra.mxu0 0.0
        %352 = vmatprep.subr.mxu0 0.0
        %353 = vmatpush1.msra.mxu0 0.0
        %354 = vmatprep.subr.mxu0 0.0
        %355 = vmatpush1.msra.mxu0 0.0
        %356 = vmatprep.subr.mxu0 0.0
        %357 = vmatpush1.msra.mxu0 0.0
        %358 = vmatprep.subr.mxu0 0.0
        %359 = vmatpush1.msra.mxu0 0.0
        %360 = vmatprep.subr.mxu0 0.0
        %361 = vmatpush1.msra.mxu0 0.0
        %362 = vmatprep.subr.mxu0 0.0
        %363 = vmatpush1.msra.mxu0 0.0
        %364 = vmatprep.subr.mxu0 0.0
        %365 = vmatpush1.msra.mxu0 0.0
        %366 = vmatprep.subr.mxu0 0.0
        %367 = vmatpush1.msra.mxu0 0.0
        %368 = vmatprep.subr.mxu0 0.0
        %369 = vmatpush1.msra.mxu0 0.0
        %370 = vmatprep.subr.mxu0 0.0
        %371 = vmatpush1.msra.mxu0 0.0
        %372 = vmatprep.subr.mxu0 0.0
        %373 = vmatpush1.msra.mxu0 0.0
        %374 = vmatprep.subr.mxu0 0.0
        %375 = vmatpush1.msra.mxu0 0.0
        %376 = vmatprep.subr.mxu0 0.0
        %377 = vmatpush1.msra.mxu0 0.0
        %378 = vmatprep.subr.mxu0 0.0
        %379 = vmatpush1.msra.mxu0 0.0
        %380 = vmatprep.subr.mxu0 0.0
        %381 = vmatpush1.msra.mxu0 0.0
        %382 = vmatprep.subr.mxu0 0.0
        %383 = vmatpush1.msra.mxu0 0.0
        %384 = vmatprep.subr.mxu0 0.0
        %385 = vmatpush1.msra.mxu0 0.0
        %386 = vmatprep.subr.mxu0 0.0
        %387 = vmatpush1.msra.mxu0 0.0
        %388 = vmatprep.subr.mxu0 0.0
        %389 = vmatpush1.msra.mxu0 0.0
        %390 = vmatprep.mubr.f32.mxu0 0.0
        %391 = vmatmul.mubr.f32.gmra.mrb[0].mxu0 %v324
        %v392 = vpop.f32.mrb[0].mxu0
        %v393 = vadd.f32 0.0, %v392
        %v394 = vpop.f32.mrb[0].mxu0
        %395 = vdwg.mxu0
        %v396 = vadd.f32 %v319, %v393
        %s397 = scalar_lea.vmem [#allocation4], 8
        %v398 = vld [vmem:[%s397] sm:$0xff]
        %v399 = vld [vmem:[#allocation3] sm:$0xff]
        %v400 = vld [vmem:[#allocation3 + $0x8] sm:$0xff]
        %403 = vrot.lane.b32.xlu0 %v399, 127
        %v404 = vpop.permute.xlu0 %403
        %405 = vrot.lane.b32.xlu0 %v400, 127
        %v406 = vpop.permute.xlu0 %405
        %vm407 = vcmask 1039360
        %v408 = vsel %vm407, %v404, %v406
        %v411 = vsel %vm322, %v398, 0
        %413 = vmatprep.subr.mxu0 0.0
        %414 = vmatpush1.msra.mxu0 %v408
        %415 = vmatprep.subr.mxu0 0.0
        %416 = vmatpush1.msra.mxu0 0.0
        %417 = vmatprep.subr.mxu0 0.0
        %418 = vmatpush1.msra.mxu0 0.0
        %419 = vmatprep.subr.mxu0 0.0
        %420 = vmatpush1.msra.mxu0 0.0
        %421 = vmatprep.subr.mxu0 0.0
        %422 = vmatpush1.msra.mxu0 0.0
        %423 = vmatprep.subr.mxu0 0.0
        %424 = vmatpush1.msra.mxu0 0.0
        %425 = vmatprep.subr.mxu0 0.0
        %426 = vmatpush1.msra.mxu0 0.0
        %427 = vmatprep.subr.mxu0 0.0
        %428 = vmatpush1.msra.mxu0 0.0
        %429 = vmatprep.subr.mxu0 0.0
        %430 = vmatpush1.msra.mxu0 0.0
        %431 = vmatprep.subr.mxu0 0.0
        %432 = vmatpush1.msra.mxu0 0.0
        %433 = vmatprep.subr.mxu0 0.0
        %434 = vmatpush1.msra.mxu0 0.0
        %435 = vmatprep.subr.mxu0 0.0
        %436 = vmatpush1.msra.mxu0 0.0
        %437 = vmatprep.subr.mxu0 0.0
        %438 = vmatpush1.msra.mxu0 0.0
        %439 = vmatprep.subr.mxu0 0.0
        %440 = vmatpush1.msra.mxu0 0.0
        %441 = vmatprep.subr.mxu0 0.0
        %442 = vmatpush1.msra.mxu0 0.0
        %443 = vmatprep.subr.mxu0 0.0
        %444 = vmatpush1.msra.mxu0 0.0
        %445 = vmatprep.subr.mxu0 0.0
        %446 = vmatpush1.msra.mxu0 0.0
        %447 = vmatprep.subr.mxu0 0.0
        %448 = vmatpush1.msra.mxu0 0.0
        %449 = vmatprep.subr.mxu0 0.0
        %450 = vmatpush1.msra.mxu0 0.0
        %451 = vmatprep.subr.mxu0 0.0
        %452 = vmatpush1.msra.mxu0 0.0
        %453 = vmatprep.subr.mxu0 0.0
        %454 = vmatpush1.msra.mxu0 0.0
        %455 = vmatprep.subr.mxu0 0.0
        %456 = vmatpush1.msra.mxu0 0.0
        %457 = vmatprep.subr.mxu0 0.0
        %458 = vmatpush1.msra.mxu0 0.0
        %459 = vmatprep.subr.mxu0 0.0
        %460 = vmatpush1.msra.mxu0 0.0
        %461 = vmatprep.subr.mxu0 0.0
        %462 = vmatpush1.msra.mxu0 0.0
        %463 = vmatprep.subr.mxu0 0.0
        %464 = vmatpush1.msra.mxu0 0.0
        %465 = vmatprep.subr.mxu0 0.0
        %466 = vmatpush1.msra.mxu0 0.0
        %467 = vmatprep.subr.mxu0 0.0
        %468 = vmatpush1.msra.mxu0 0.0
        %469 = vmatprep.subr.mxu0 0.0
        %470 = vmatpush1.msra.mxu0 0.0
        %471 = vmatprep.subr.mxu0 0.0
        %472 = vmatpush1.msra.mxu0 0.0
        %473 = vmatprep.subr.mxu0 0.0
        %474 = vmatpush1.msra.mxu0 0.0
        %475 = vmatprep.subr.mxu0 0.0
        %476 = vmatpush1.msra.mxu0 0.0
        %477 = vmatprep.mubr.f32.mxu0 0.0
        %478 = vmatmul.mubr.f32.gmra.mrb[0].mxu0 %v411
        %v479 = vpop.f32.mrb[0].mxu0
        %v480 = vadd.f32 0.0, %v479
        %v481 = vpop.f32.mrb[0].mxu0
        %482 = vdwg.mxu0
        %v483 = vadd.f32 %v396, %v480
        %s484 = scalar_lea.vmem [#allocation4], 16
        %v485 = vld [vmem:[%s484] sm:$0xff]
        %486 = vrot.lane.b32.xlu0 %v399, 126
        %v487 = vpop.permute.xlu0 %486
        %488 = vrot.lane.b32.xlu0 %v400, 126
        %v489 = vpop.permute.xlu0 %488
        %vm490 = vcmask 1031168
        %v491 = vsel %vm490, %v487, %v489
        %v494 = vsel %vm322, %v485, 0
        %496 = vmatprep.subr.mxu0 0.0
        %497 = vmatpush1.msra.mxu0 %v491
        %498 = vmatprep.subr.mxu0 0.0
        %499 = vmatpush1.msra.mxu0 0.0
        %500 = vmatprep.subr.mxu0 0.0
        %501 = vmatpush1.msra.mxu0 0.0
        %502 = vmatprep.subr.mxu0 0.0
        %503 = vmatpush1.msra.mxu0 0.0
        %504 = vmatprep.subr.mxu0 0.0
        %505 = vmatpush1.msra.mxu0 0.0
        %506 = vmatprep.subr.mxu0 0.0
        %507 = vmatpush1.msra.mxu0 0.0
        %508 = vmatprep.subr.mxu0 0.0
        %509 = vmatpush1.msra.mxu0 0.0
        %510 = vmatprep.subr.mxu0 0.0
        %511 = vmatpush1.msra.mxu0 0.0
        %512 = vmatprep.subr.mxu0 0.0
        %513 = vmatpush1.msra.mxu0 0.0
        %514 = vmatprep.subr.mxu0 0.0
        %515 = vmatpush1.msra.mxu0 0.0
        %516 = vmatprep.subr.mxu0 0.0
        %517 = vmatpush1.msra.mxu0 0.0
        %518 = vmatprep.subr.mxu0 0.0
        %519 = vmatpush1.msra.mxu0 0.0
        %520 = vmatprep.subr.mxu0 0.0
        %521 = vmatpush1.msra.mxu0 0.0
        %522 = vmatprep.subr.mxu0 0.0
        %523 = vmatpush1.msra.mxu0 0.0
        %524 = vmatprep.subr.mxu0 0.0
        %525 = vmatpush1.msra.mxu0 0.0
        %526 = vmatprep.subr.mxu0 0.0
        %527 = vmatpush1.msra.mxu0 0.0
        %528 = vmatprep.subr.mxu0 0.0
        %529 = vmatpush1.msra.mxu0 0.0
        %530 = vmatprep.subr.mxu0 0.0
        %531 = vmatpush1.msra.mxu0 0.0
        %532 = vmatprep.subr.mxu0 0.0
        %533 = vmatpush1.msra.mxu0 0.0
        %534 = vmatprep.subr.mxu0 0.0
        %535 = vmatpush1.msra.mxu0 0.0
        %536 = vmatprep.subr.mxu0 0.0
        %537 = vmatpush1.msra.mxu0 0.0
        %538 = vmatprep.subr.mxu0 0.0
        %539 = vmatpush1.msra.mxu0 0.0
        %540 = vmatprep.subr.mxu0 0.0
        %541 = vmatpush1.msra.mxu0 0.0
        %542 = vmatprep.subr.mxu0 0.0
        %543 = vmatpush1.msra.mxu0 0.0
        %544 = vmatprep.subr.mxu0 0.0
        %545 = vmatpush1.msra.mxu0 0.0
        %546 = vmatprep.subr.mxu0 0.0
        %547 = vmatpush1.msra.mxu0 0.0
        %548 = vmatprep.subr.mxu0 0.0
        %549 = vmatpush1.msra.mxu0 0.0
        %550 = vmatprep.subr.mxu0 0.0
        %551 = vmatpush1.msra.mxu0 0.0
        %552 = vmatprep.subr.mxu0 0.0
        %553 = vmatpush1.msra.mxu0 0.0
        %554 = vmatprep.subr.mxu0 0.0
        %555 = vmatpush1.msra.mxu0 0.0
        %556 = vmatprep.subr.mxu0 0.0
        %557 = vmatpush1.msra.mxu0 0.0
        %558 = vmatprep.subr.mxu0 0.0
        %559 = vmatpush1.msra.mxu0 0.0
        %560 = vmatprep.mubr.f32.mxu0 0.0
        %561 = vmatmul.mubr.f32.gmra.mrb[0].mxu0 %v494
        %v562 = vpop.f32.mrb[0].mxu0
        %v563 = vadd.f32 0.0, %v562
        %v564 = vpop.f32.mrb[0].mxu0
        %565 = vdwg.mxu0
        %v566 = vadd.f32 %v483, %v563
        %567 = vst [vmem:[#allocation2] sm:$0xff] %v566
        // Predicated region
        $region53: #{tpu_custom_call.1} parent=35 // pred_check
          %p568 = pneg %p310
        $region54: #{tpu_custom_call.1} parent=35 // pred_check_branch
          %570 = sbr.rel (%p568) target = $region56
        $region55: #{tpu_custom_call.1} parent=35 // pred_region
          %v571 = vld [vmem:[#allocation2] sm:$0xff]
          %v572 = vld [vmem:[%s1] sm:$0xff]
          %574 = vset.pattern.permute.xlu0 0
          %575 = vperm.xlu0 %574, %v572
          %v576 = vpop.permute.xlu0 %575
          %v578 = vadd.f32 %v571, %v576
          %579 = vst [vmem:[%s308] sm:$0xff] %v578
        $region56: #{tpu_custom_call.1} parent=35 // pred_fallthru
          _
        %s580 = sand.u32 %s160, 1
        %s581 = scalar_lea.sflag [#allocation6], %s580
        %s582 = sand.u32 %s160, 1
        %s583 = smul.addr %s582, 8
        %s584 = scalar_lea.vmem [#allocation10], %s583
        // Predicated region
        $region57: #{tpu_custom_call.1} parent=35 // pred_check
          %p585 = pneg %p170
        $region58: #{tpu_custom_call.1} parent=35 // pred_check_branch
          %587 = sbr.rel (%p585) target = $region60
        $region59: #{tpu_custom_call.1} parent=35 // pred_region
          %s589 = ssub.s32 128, 128
          %590 = vsyncadd %s581, %s589
          %s591 = sadd.s32 %s28, %s27
          %s592 = smul.addr %s591, 128
          %s593 = scalar_lea.hbm %s4, %s592
          %s595 = sshll.u32 %s584, 4
          %s596 = int_to_ptr.vmem [resolvable:$true] %s595
          %598 = dma.vmem_to_hbm [thread:$0]  %s596, 128, %s593, %s581
        $region60: #{tpu_custom_call.1} parent=35 // pred_fallthru
          _
      $region36: #{tpu_custom_call.1} parent=5 // pred_fallthru
        _
      %p599 = scmp.le.s32.totalorder 2, %s17
      // Predicated region
      $region61: #{tpu_custom_call.1} parent=5 // pred_check
        %p600 = pneg %p599
      $region62: #{tpu_custom_call.1} parent=5 // pred_check_branch
        %602 = sbr.rel (%p600) target = $region64
      $region63: #{tpu_custom_call.1} parent=5 // pred_region
        %s603 = ssub.s32 %s17, 2
        // Predicated region
        $region65: #{tpu_custom_call.1} parent=63 // pred_check
          %p604 = pneg %p176
        $region66: #{tpu_custom_call.1} parent=63 // pred_check_branch
          %606 = sbr.rel (%p604) target = $region68
        $region67: #{tpu_custom_call.1} parent=63 // pred_region
          %s607 = sand.u32 %s161, 1
          %s608 = scalar_lea.sflag [#allocation6], %s607
          %s609 = sand.u32 %s161, 1
          %s610 = smul.addr %s609, 8
          %s611 = scalar_lea.vmem [#allocation10], %s610
          %612 = dma.done %s608, 128
        $region68: #{tpu_custom_call.1} parent=63 // pred_fallthru
          _
      $region64: #{tpu_custom_call.1} parent=5 // pred_fallthru
        _
    $region6: #{tpu_custom_call.1} parent=1 // loop_footer
      %s21 = sadd.s32 1, %s17
    $region7: #{tpu_custom_call.1} parent=1 // loop_footer_branch
      %16 = sbr.rel target = $region3
    $region8: #{tpu_custom_call.1} parent=1 // loop_exit
      _
    %613 = vsyncpa [#allocation5], 1
    %s614 = scalar_lea.sflag [#allocation5], 1
    %615 = vsyncpa %s614, 1
    %616 = vsyncpa [#allocation8], 1
    %s617 = scalar_lea.sflag [#allocation8], 1
    %618 = vsyncpa %s617, 1
    %619 = vsyncpa [#allocation6], 1
    %s620 = scalar_lea.sflag [#allocation6], 1
    %621 = vsyncpa %s620, 1

</llo_original>
